<compile_context>
chip_gen: v6e
topology: v6e:2x2x1
jax: 0.10.0
libtpu: 0.0.40
codegen_flags: <defaults>
</compile_context>

<pallas_src>
import jax
import jax.numpy as jnp
from jax.experimental import pallas as pl
from jax.experimental.pallas import tpu as pltpu


def _random_aug_kernel(x_ref, keep_ref, g_ref, b_ref, o_ref):
    """x_ref/o_ref: (bt, C*H*W) VMEM; keep_ref: (bt, 1) VMEM (0/1 in x dtype);
    g_ref/b_ref: (1, C*H*W) VMEM (per-channel affine pre-expanded to a row)."""
    x = x_ref[...]
    keep = keep_ref[...] > 0.0                    # (bt, 1) column; broadcast in select
    aug = x * g_ref[...] + b_ref[...]             # fused per-channel affine (VPU)
    o_ref[...] = jnp.where(keep, aug, x)          # single vsel per vreg, full-lane vst


def _block_target_bytes():
    """Per-generation VMEM block target (double-buffered in+out ~= 4x block)."""
    kind = ""
    try:
        kind = jax.devices()[0].device_kind.lower()
    except Exception:
        pass
    if "v7" in kind:
        return 6 << 20, True    # 24 MiB d-buffered < 32 MiB scoped; 2 TCs -> want >=2 grid steps
    if "v6" in kind:
        return 4 << 20, False   # 16 MiB d-buffered < 32 MiB scoped
    return 3 << 20, False       # v5e-safe: 12 MiB d-buffered < 16 MiB scoped default


def _pick_batch_tile(n, row_bytes, itemsize, *, target_bytes, want_two_steps):
    """Batch rows per block: as large as the VMEM target allows, rounded to the
    dtype's sublane tile; optionally capped so the grid has >= 2 steps (v7x)."""
    sub = {1: 32, 2: 16}.get(itemsize, 8)
    if n <= sub or (not want_two_steps and n * row_bytes <= target_bytes):
        return n                                     # single full-batch block (exempt)
    bt = max(1, target_bytes // row_bytes)           # VMEM-target cap
    if want_two_steps:
        bt = min(bt, -(-n // 2))                     # ceil(n/2) -> >= 2 grid steps
    bt = min(bt, n)
    bt = max(sub, (bt // sub) * sub)                 # sublane-tile multiple
    return min(bt, n)


def random_augmentation_pallas(x, gamma, beta, keep):
    """x: (N, C, H, W); gamma/beta: (C,); keep: (N,) 0/1 per-sample mask."""
    N, C, H, W = x.shape
    hw = H * W
    chw = C * hw
    x2 = x.reshape(N, chw)                           # lane-dense last dim
    keep2 = keep.reshape(N, 1).astype(x.dtype)
    # Pre-expand per-channel affine to a (1, C*H*W) row (tiny, reused every step).
    g_row = jnp.repeat(gamma.astype(x.dtype), hw).reshape(1, chw)
    b_row = jnp.repeat(beta.astype(x.dtype), hw).reshape(1, chw)

    itemsize = jnp.dtype(x.dtype).itemsize
    target, two_steps = _block_target_bytes()
    bt = _pick_batch_tile(N, chw * itemsize, itemsize,
                          target_bytes=target, want_two_steps=two_steps)
    grid = (pl.cdiv(N, bt),)

    out2 = pl.pallas_call(
        _random_aug_kernel,
        out_shape=jax.ShapeDtypeStruct((N, chw), x.dtype),
        grid_spec=pltpu.PrefetchScalarGridSpec(
            num_scalar_prefetch=0,
            grid=grid,
            in_specs=[
                pl.BlockSpec((bt, chw), lambda i: (i, 0)),   # images
                pl.BlockSpec((bt, 1), lambda i: (i, 0)),     # keep column
                pl.BlockSpec((1, chw), lambda i: (0, 0)),    # gamma row
                pl.BlockSpec((1, chw), lambda i: (0, 0)),    # beta row
            ],
            out_specs=pl.BlockSpec((bt, chw), lambda i: (i, 0)),
        ),
        compiler_params=pltpu.CompilerParams(
            # Independent per-sample tiles: shard grid steps across v7x's two
            # TensorCores; measured-neutral on single-TC v5e/v6e.
            dimension_semantics=("parallel",)),
        cost_estimate=pl.CostEstimate(
            flops=3 * N * chw,                       # mul + add + select / element
            transcendentals=0,
            bytes_accessed=2 * itemsize * N * chw),  # bandwidth-bound
    )(x2, keep2, g_row, b_row)
    return out2.reshape(N, C, H, W)


def random_augmentation_forward(images, key, *, p=0.5, same_on_batch=False):
    """Replicates RandomAugmentation.forward control flow; select runs in Pallas."""
    N, C, H, W = images.shape
    # Deterministic "augmentation" parameters (per-channel affine), shape (C,).
    gamma = 1.0 + 0.05 * jnp.arange(C, dtype=jnp.float32)
    beta = 0.01 * jnp.arange(C, dtype=jnp.float32)

    # TODO(synk): the wrapped `augmentation` nn.Module is arbitrary in PyTorch;
    # it is modeled here as a fused per-channel affine inside the kernel.
    is_batch = N < 4  # (naming follows the original PyTorch source)
    if (not is_batch) or same_on_batch:
        # One Bernoulli(p) decision for the whole batch; skip the HBM pass
        # entirely when the decision is "keep originals".
        r = jax.random.uniform(key, ())
        apply_aug = r <= p
        keep = jnp.broadcast_to(apply_aug.astype(jnp.float32), (N,))
        out = jax.lax.cond(
            apply_aug,
            lambda im: random_augmentation_pallas(
                im, gamma, beta, jnp.ones((N,), jnp.float32)),
            lambda im: im,
            images,
        )
    else:
        # Per-sample: out = aug(x); restore originals where rand > p.
        r = jax.random.uniform(key, (N,))
        keep = (r <= p).astype(jnp.float32)
        out = random_augmentation_pallas(images, gamma, beta, keep)
    return out, keep, gamma, beta


if __name__ == "__main__":
    key = jax.random.PRNGKey(0)
    k_img, k_rand, k_rand2 = jax.random.split(key, 3)

    # Small shapes consistent with an image-augmentation module.
    N, C, H, W = 2, 4, 16, 16
    x = jax.random.normal(k_img, (N, C, H, W), dtype=jnp.float32)

    # Per-sample branch (N < 4, same_on_batch=False): kernel always runs.
    out, keep, gamma, beta = random_augmentation_forward(
        x, k_rand, p=0.5, same_on_batch=False)
    out = jax.block_until_ready(out)

    g4 = gamma.reshape(1, C, 1, 1)
    b4 = beta.reshape(1, C, 1, 1)
    aug_ref = x * g4 + b4
    ref = jnp.where(keep.reshape(N, 1, 1, 1) > 0, aug_ref, x)
    assert out.shape == x.shape and out.dtype == x.dtype
    assert jnp.allclose(out, ref, atol=1e-6), "per-sample branch mismatch"

    # Whole-batch branch (same_on_batch=True): launch is skipped when the
    # batch-level decision is "keep originals".
    out2, keep2, _, _ = random_augmentation_forward(
        x, k_rand2, p=0.5, same_on_batch=True)
    out2 = jax.block_until_ready(out2)
    ref2 = jnp.where(keep2.reshape(N, 1, 1, 1) > 0, aug_ref, x)
    assert jnp.allclose(out2, ref2, atol=1e-6), "whole-batch branch mismatch"

    # bf16 end-to-end smoke check (dtype-aware sublane rounding, half HBM bytes).
    xb = x.astype(jnp.bfloat16)
    keep_b = jnp.array([1.0, 0.0], jnp.float32)
    out_b = jax.block_until_ready(
        random_augmentation_pallas(xb, gamma, beta, keep_b))
    ref_b = jnp.where(keep_b.reshape(N, 1, 1, 1) > 0,
                      xb * g4.astype(jnp.bfloat16) + b4.astype(jnp.bfloat16), xb)
    assert out_b.dtype == jnp.bfloat16
    assert jnp.allclose(out_b.astype(jnp.float32), ref_b.astype(jnp.float32),
                        atol=2e-2), "bf16 branch mismatch"

    print("KERNEL_OK")
</pallas_src>

<mosaic_0001>
module attributes {stable_mosaic.version = 11 : i64} {
  func.func @_random_aug_kernel(%arg0: i32, %arg1: memref<2x1024xf32, #tpu.memory_space<vmem>>, %arg2: memref<2x1xf32, #tpu.memory_space<vmem>>, %arg3: memref<1x1024xf32, #tpu.memory_space<vmem>>, %arg4: memref<1x1024xf32, #tpu.memory_space<vmem>>, %arg5: memref<2x1024xf32, #tpu.memory_space<vmem>>) attributes {dimension_semantics = [#tpu.dimension_semantics<parallel>], iteration_bounds = array<i64: 1>, scalar_prefetch = 0 : i64, scratch_operands = 0 : i64, tpu.core_type = #tpu.core_type<tc>, window_params = [{transform_indices = @transform_0, window_bounds = array<i64: 2, 1024>}, {transform_indices = @transform_1, window_bounds = array<i64: 2, 1>}, {pipeline_mode = #tpu.pipeline_mode<synchronous>, transform_indices = @transform_2, window_bounds = array<i64: 1, 1024>}, {pipeline_mode = #tpu.pipeline_mode<synchronous>, transform_indices = @transform_3, window_bounds = array<i64: 1, 1024>}, {transform_indices = @transform_4, window_bounds = array<i64: 2, 1024>}]} {
    %c0 = arith.constant 0 : index
    %c0_0 = arith.constant 0 : index
    %0 = vector.load %arg1[%c0, %c0_0] : memref<2x1024xf32, #tpu.memory_space<vmem>>, vector<2x1024xf32>
    %c0_1 = arith.constant 0 : index
    %c0_2 = arith.constant 0 : index
    %1 = vector.load %arg2[%c0_1, %c0_2] : memref<2x1xf32, #tpu.memory_space<vmem>>, vector<2x1xf32>
    %cst = arith.constant 0.000000e+00 : f32
    %2 = vector.broadcast %cst : f32 to vector<2x1xf32>
    %3 = arith.cmpf ogt, %1, %2 : vector<2x1xf32>
    %c0_3 = arith.constant 0 : index
    %c0_4 = arith.constant 0 : index
    %4 = vector.load %arg3[%c0_3, %c0_4] : memref<1x1024xf32, #tpu.memory_space<vmem>>, vector<1x1024xf32>
    %5 = vector.broadcast %4 : vector<1x1024xf32> to vector<2x1024xf32>
    %6 = arith.mulf %0, %5 : vector<2x1024xf32>
    %c0_5 = arith.constant 0 : index
    %c0_6 = arith.constant 0 : index
    %7 = vector.load %arg4[%c0_5, %c0_6] : memref<1x1024xf32, #tpu.memory_space<vmem>>, vector<1x1024xf32>
    %8 = vector.broadcast %7 : vector<1x1024xf32> to vector<2x1024xf32>
    %9 = arith.addf %6, %8 : vector<2x1024xf32>
    %10 = vector.shape_cast %3 : vector<2x1xi1> to vector<2x1xi1>
    %11 = vector.broadcast %10 : vector<2x1xi1> to vector<2x1024xi1>
    %12 = arith.select %11, %9, %0 : vector<2x1024xi1>, vector<2x1024xf32>
    %c0_7 = arith.constant 0 : index
    %c0_8 = arith.constant 0 : index
    %13 = vector.load %arg5[%c0_7, %c0_8] : memref<2x1024xf32, #tpu.memory_space<vmem>>, vector<2x1024xf32>
    tpu.vector_store %arg5[%c0_7, %c0_8], %12 {strides = array<i32>} : memref<2x1024xf32, #tpu.memory_space<vmem>>, vector<2x1024xf32>,
    return
  }
  func.func @transform_0(%arg0: i32) -> (i32, i32) {
    %c0_i32 = arith.constant 0 : i32
    %c0_i32_0 = arith.constant 0 : i32
    return %arg0, %c0_i32 : i32, i32
  }
  func.func @transform_1(%arg0: i32) -> (i32, i32) {
    %c0_i32 = arith.constant 0 : i32
    %c0_i32_0 = arith.constant 0 : i32
    return %arg0, %c0_i32 : i32, i32
  }
  func.func @transform_2(%arg0: i32) -> (i32, i32) {
    %c0_i32 = arith.constant 0 : i32
    %c0_i32_0 = arith.constant 0 : i32
    %c0_i32_1 = arith.constant 0 : i32
    return %c0_i32, %c0_i32_0 : i32, i32
  }
  func.func @transform_3(%arg0: i32) -> (i32, i32) {
    %c0_i32 = arith.constant 0 : i32
    %c0_i32_0 = arith.constant 0 : i32
    %c0_i32_1 = arith.constant 0 : i32
    return %c0_i32, %c0_i32_0 : i32, i32
  }
  func.func @transform_4(%arg0: i32) -> (i32, i32) {
    %c0_i32 = arith.constant 0 : i32
    %c0_i32_0 = arith.constant 0 : i32
    return %arg0, %c0_i32 : i32, i32
  }
}

</mosaic_0001>

<llo_original>
// kernel: tpu_custom_call.1
$region0: #{tpu_custom_call.1}
  #allocation0 [shape = 'u32[]', space=smem, size = 0x4, offset = 0x4, fixed_abs, tag = 'smem constant byte address 0x4 - core index']
  #allocation1 [shape = 'u32[144,128]{1,0:T(1,128)}', space=vmem, size = 0x12000, scoped, tag = 'internal scratch']
  %s0 = inlined_call_operand.hbm [shape: f32[2,1024], index: 0, kind: input, shape index: {}]
  %s1 = inlined_call_operand.vmem [shape: f32[2,1], index: 1, kind: input, shape index: {}]
  %s2 = inlined_call_operand.hbm [shape: f32[1,1024], index: 2, kind: input, shape index: {}]
  %s3 = inlined_call_operand.vmem [shape: f32[1,1024], index: 3, kind: input, shape index: {}]
  %s4 = inlined_call_operand.hbm [shape: f32[2,1024], index: 4, kind: output, shape index: {}]
  %s5 = sld [smem:[#allocation0]]
  $region34: #{tpu_custom_call.1} parent=0
    _
  %s7 = ssub.s32 1, %s5
  %s8 = scalar_select 0, %s7, %s5
  $region1: #{tpu_custom_call.1} parent=0
    #allocation2 [shape = 'u8[8192]{0}', space=vmem, size = 0x2000, scoped, tag = 'input window, operand 0, single buffered']
    #allocation3 [shape = 's32[1]{0}', space=sflag, size = 0x4, scoped, tag = 'scoped memory for tpu_custom_call.1']
    #allocation4 [shape = 's32[1]{0}', space=sflag, size = 0x4, scoped, tag = 'scoped memory for tpu_custom_call.1']
    #allocation5 [shape = 'u8[4096]{0}', space=vmem, size = 0x1000, scoped, tag = 'input window, operand 2, single buffered']
    #allocation6 [shape = 's32[1]{0}', space=sflag, size = 0x4, scoped, tag = 'scoped memory for tpu_custom_call.1']
    #allocation7 [shape = 'u8[8192]{0}', space=vmem, size = 0x2000, scoped, tag = 'output window, operand 0, single buffered']
    %9 = vsyncpa [#allocation3], 0
    %10 = vsyncpa [#allocation6], 0
    %11 = vsyncpa [#allocation4], 0
    // Predicated region
    $region2: #{tpu_custom_call.1} parent=1 // pred_check
      _
    $region3: #{tpu_custom_call.1} parent=1 // pred_check_branch
      %13 = sbr.rel (0) target = $region5
    $region4: #{tpu_custom_call.1} parent=1 // pred_region
      %s15 = ssub.s32 256, 256
      %16 = vsyncadd [#allocation3], %s15
      %s18 = sshll.u32 [#allocation2], 4
      %s19 = int_to_ptr.vmem [resolvable:$true] %s18
      %21 = dma.hbm_to_vmem [thread:$0]  %s0, 256, %s19, [#allocation3]
    $region5: #{tpu_custom_call.1} parent=1 // pred_fallthru
      _
    // Predicated region
    $region6: #{tpu_custom_call.1} parent=1 // pred_check
      _
    $region7: #{tpu_custom_call.1} parent=1 // pred_check_branch
      %23 = sbr.rel (0) target = $region9
    $region8: #{tpu_custom_call.1} parent=1 // pred_region
      _
    $region9: #{tpu_custom_call.1} parent=1 // pred_fallthru
      _
    // Predicated region
    $region10: #{tpu_custom_call.1} parent=1 // pred_check
      _
    $region11: #{tpu_custom_call.1} parent=1 // pred_check_branch
      %25 = sbr.rel (0) target = $region13
    $region12: #{tpu_custom_call.1} parent=1 // pred_region
      %s27 = ssub.s32 128, 128
      %28 = vsyncadd [#allocation6], %s27
      %s30 = sshll.u32 [#allocation5], 4
      %s31 = int_to_ptr.vmem [resolvable:$true] %s30
      %33 = dma.hbm_to_vmem [thread:$0]  %s2, 128, %s31, [#allocation6]
    $region13: #{tpu_custom_call.1} parent=1 // pred_fallthru
      _
    // Predicated region
    $region14: #{tpu_custom_call.1} parent=1 // pred_check
      _
    $region15: #{tpu_custom_call.1} parent=1 // pred_check_branch
      %35 = sbr.rel (0) target = $region17
    $region16: #{tpu_custom_call.1} parent=1 // pred_region
      _
    $region17: #{tpu_custom_call.1} parent=1 // pred_fallthru
      _
    // Predicated region
    $region18: #{tpu_custom_call.1} parent=1 // pred_check
      _
    $region19: #{tpu_custom_call.1} parent=1 // pred_check_branch
      %37 = sbr.rel (0) target = $region21
    $region20: #{tpu_custom_call.1} parent=1 // pred_region
      %38 = dma.done [#allocation3], 256
    $region21: #{tpu_custom_call.1} parent=1 // pred_fallthru
      _
    // Predicated region
    $region22: #{tpu_custom_call.1} parent=1 // pred_check
      _
    $region23: #{tpu_custom_call.1} parent=1 // pred_check_branch
      %40 = sbr.rel (0) target = $region25
    $region24: #{tpu_custom_call.1} parent=1 // pred_region
      %41 = dma.done [#allocation6], 128
    $region25: #{tpu_custom_call.1} parent=1 // pred_fallthru
      _
    %v42 = vld [vmem:[#allocation2] sm:$0xff]
    %v43 = vld [vmem:[#allocation2 + $0x8] sm:$0xff]
    %v44 = vld [vmem:[%s1] sm:$0x3]
    %vm45 = vcmp.gt.f32.partialorder %v44, 0.0
    %v46 = vld [vmem:[#allocation5] sm:$0xff]
    %v48 = vlaneseq
    %v49 = vshrl.u32 %v48, 7
    %v50 = vsub.s32 0, %v49
    %v51 = vrot.slane %v46, %v50
    %v52 = vlaneseq
    %v53 = vshrl.u32 %v52, 7
    %v54 = vsub.s32 1, %v53
    %v55 = vrot.slane %v46, %v54
    %v56 = vlaneseq
    %v57 = vshrl.u32 %v56, 7
    %v58 = vsub.s32 2, %v57
    %v59 = vrot.slane %v46, %v58
    %v60 = vlaneseq
    %v61 = vshrl.u32 %v60, 7
    %v62 = vsub.s32 3, %v61
    %v63 = vrot.slane %v46, %v62
    %v64 = vlaneseq
    %v65 = vshrl.u32 %v64, 7
    %v66 = vsub.s32 4, %v65
    %v67 = vrot.slane %v46, %v66
    %v68 = vlaneseq
    %v69 = vshrl.u32 %v68, 7
    %v70 = vsub.s32 5, %v69
    %v71 = vrot.slane %v46, %v70
    %v72 = vlaneseq
    %v73 = vshrl.u32 %v72, 7
    %v74 = vsub.s32 6, %v73
    %v75 = vrot.slane %v46, %v74
    %v76 = vlaneseq
    %v77 = vshrl.u32 %v76, 7
    %v78 = vsub.s32 7, %v77
    %v79 = vrot.slane %v46, %v78
    %v80 = vcombine.low %v51, %v55
    %v81 = vcombine.low %v59, %v63
    %v83 = vunpack.c.l.s4 1983009808
    %v84 = vunpack.c.0.s8 %v83
    %v85 = vlaneseq
    %v86 = vshrl.u32 %v85, 7
    %v87 = vsub.s32 %v84, %v86
    %v88 = vrot.slane %v80, %v87
    %v90 = vunpack.c.l.s4 1983009808
    %v91 = vunpack.c.0.s8 %v90
    %v92 = vlaneseq
    %v93 = vshrl.u32 %v92, 7
    %v94 = vsub.s32 %v91, %v93
    %v95 = vrot.slane %v81, %v94
    %v96 = vcombine.low %v88, %v95
    %v97 = vcombine.low %v67, %v71
    %v98 = vcombine.low %v75, %v79
    %v100 = vunpack.c.l.s4 1983009808
    %v101 = vunpack.c.0.s8 %v100
    %v102 = vlaneseq
    %v103 = vshrl.u32 %v102, 7
    %v104 = vsub.s32 %v101, %v103
    %v105 = vrot.slane %v97, %v104
    %v107 = vunpack.c.l.s4 1983009808
    %v108 = vunpack.c.0.s8 %v107
    %v109 = vlaneseq
    %v110 = vshrl.u32 %v109, 7
    %v111 = vsub.s32 %v108, %v110
    %v112 = vrot.slane %v98, %v111
    %v113 = vcombine.low %v105, %v112
    %v116 = vmul.f32 %v42, %v96
    %v117 = vmul.f32 %v43, %v113
    %v118 = vld [vmem:[%s3] sm:$0xff]
    %v120 = vlaneseq
    %v121 = vshrl.u32 %v120, 7
    %v122 = vsub.s32 0, %v121
    %v123 = vrot.slane %v118, %v122
    %v124 = vlaneseq
    %v125 = vshrl.u32 %v124, 7
    %v126 = vsub.s32 1, %v125
    %v127 = vrot.slane %v118, %v126
    %v128 = vlaneseq
    %v129 = vshrl.u32 %v128, 7
    %v130 = vsub.s32 2, %v129
    %v131 = vrot.slane %v118, %v130
    %v132 = vlaneseq
    %v133 = vshrl.u32 %v132, 7
    %v134 = vsub.s32 3, %v133
    %v135 = vrot.slane %v118, %v134
    %v136 = vlaneseq
    %v137 = vshrl.u32 %v136, 7
    %v138 = vsub.s32 4, %v137
    %v139 = vrot.slane %v118, %v138
    %v140 = vlaneseq
    %v141 = vshrl.u32 %v140, 7
    %v142 = vsub.s32 5, %v141
    %v143 = vrot.slane %v118, %v142
    %v144 = vlaneseq
    %v145 = vshrl.u32 %v144, 7
    %v146 = vsub.s32 6, %v145
    %v147 = vrot.slane %v118, %v146
    %v148 = vlaneseq
    %v149 = vshrl.u32 %v148, 7
    %v150 = vsub.s32 7, %v149
    %v151 = vrot.slane %v118, %v150
    %v152 = vcombine.low %v123, %v127
    %v153 = vcombine.low %v131, %v135
    %v155 = vunpack.c.l.s4 1983009808
    %v156 = vunpack.c.0.s8 %v155
    %v157 = vlaneseq
    %v158 = vshrl.u32 %v157, 7
    %v159 = vsub.s32 %v156, %v158
    %v160 = vrot.slane %v152, %v159
    %v162 = vunpack.c.l.s4 1983009808
    %v163 = vunpack.c.0.s8 %v162
    %v164 = vlaneseq
    %v165 = vshrl.u32 %v164, 7
    %v166 = vsub.s32 %v163, %v165
    %v167 = vrot.slane %v153, %v166
    %v168 = vcombine.low %v160, %v167
    %v169 = vcombine.low %v139, %v143
    %v170 = vcombine.low %v147, %v151
    %v172 = vunpack.c.l.s4 1983009808
    %v173 = vunpack.c.0.s8 %v172
    %v174 = vlaneseq
    %v175 = vshrl.u32 %v174, 7
    %v176 = vsub.s32 %v173, %v175
    %v177 = vrot.slane %v169, %v176
    %v179 = vunpack.c.l.s4 1983009808
    %v180 = vunpack.c.0.s8 %v179
    %v181 = vlaneseq
    %v182 = vshrl.u32 %v181, 7
    %v183 = vsub.s32 %v180, %v182
    %v184 = vrot.slane %v170, %v183
    %v185 = vcombine.low %v177, %v184
    %v188 = vadd.f32 %v116, %v168
    %v189 = vadd.f32 %v117, %v185
    %v190 = vsel %vm45, 1, 0
    %191 = vset.pattern.permute.xlu0 0
    %192 = vperm.xlu0 %191, %v190
    %v193 = vpop.permute.xlu0 %192
    %vm194 = vcmp.eq.s32.totalorder %v193, 1
    %v197 = vcombine.high %v188, %v188
    %v199 = vunpack.c.l.s4 1983009808
    %v200 = vunpack.c.0.s8 %v199
    %v201 = vlaneseq
    %v202 = vshrl.u32 %v201, 7
    %v203 = vsub.s32 %v200, %v202
    %v204 = vrot.slane %v188, %v203
    %v206 = vunpack.c.l.s4 1983009808
    %v207 = vunpack.c.0.s8 %v206
    %v208 = vlaneseq
    %v209 = vshrl.u32 %v208, 7
    %v210 = vsub.s32 %v207, %v209
    %v211 = vrot.slane %v197, %v210
    %v212 = vcombine.high %v204, %v204
    %v213 = vcombine.high %v211, %v211
    %v214 = vcombine.high %v189, %v189
    %v216 = vunpack.c.l.s4 1983009808
    %v217 = vunpack.c.0.s8 %v216
    %v218 = vlaneseq
    %v219 = vshrl.u32 %v218, 7
    %v220 = vsub.s32 %v217, %v219
    %v221 = vrot.slane %v189, %v220
    %v223 = vunpack.c.l.s4 1983009808
    %v224 = vunpack.c.0.s8 %v223
    %v225 = vlaneseq
    %v226 = vshrl.u32 %v225, 7
    %v227 = vsub.s32 %v224, %v226
    %v228 = vrot.slane %v214, %v227
    %v229 = vcombine.high %v221, %v221
    %v230 = vcombine.high %v228, %v228
    %v241 = vcombine.high %v42, %v42
    %v243 = vunpack.c.l.s4 1983009808
    %v244 = vunpack.c.0.s8 %v243
    %v245 = vlaneseq
    %v246 = vshrl.u32 %v245, 7
    %v247 = vsub.s32 %v244, %v246
    %v248 = vrot.slane %v42, %v247
    %v250 = vunpack.c.l.s4 1983009808
    %v251 = vunpack.c.0.s8 %v250
    %v252 = vlaneseq
    %v253 = vshrl.u32 %v252, 7
    %v254 = vsub.s32 %v251, %v253
    %v255 = vrot.slane %v241, %v254
    %v256 = vcombine.high %v248, %v248
    %v257 = vcombine.high %v255, %v255
    %v258 = vcombine.high %v43, %v43
    %v260 = vunpack.c.l.s4 1983009808
    %v261 = vunpack.c.0.s8 %v260
    %v262 = vlaneseq
    %v263 = vshrl.u32 %v262, 7
    %v264 = vsub.s32 %v261, %v263
    %v265 = vrot.slane %v43, %v264
    %v267 = vunpack.c.l.s4 1983009808
    %v268 = vunpack.c.0.s8 %v267
    %v269 = vlaneseq
    %v270 = vshrl.u32 %v269, 7
    %v271 = vsub.s32 %v268, %v270
    %v272 = vrot.slane %v258, %v271
    %v273 = vcombine.high %v265, %v265
    %v274 = vcombine.high %v272, %v272
    %v283 = vsel %vm194, %v204, %v248
    %v284 = vsel %vm194, %v212, %v256
    %v285 = vsel %vm194, %v211, %v255
    %v286 = vsel %vm194, %v213, %v257
    %v287 = vsel %vm194, %v221, %v265
    %v288 = vsel %vm194, %v229, %v273
    %v289 = vsel %vm194, %v228, %v272
    %v290 = vsel %vm194, %v230, %v274
    %v299 = vcombine.low %v283, %v284
    %v300 = vcombine.low %v285, %v286
    %v302 = vunpack.c.l.s4 1983009808
    %v303 = vunpack.c.0.s8 %v302
    %v304 = vlaneseq
    %v305 = vshrl.u32 %v304, 7
    %v306 = vsub.s32 %v303, %v305
    %v307 = vrot.slane %v299, %v306
    %v309 = vunpack.c.l.s4 1983009808
    %v310 = vunpack.c.0.s8 %v309
    %v311 = vlaneseq
    %v312 = vshrl.u32 %v311, 7
    %v313 = vsub.s32 %v310, %v312
    %v314 = vrot.slane %v300, %v313
    %v315 = vcombine.low %v307, %v314
    %v316 = vcombine.low %v287, %v288
    %v317 = vcombine.low %v289, %v290
    %v319 = vunpack.c.l.s4 1983009808
    %v320 = vunpack.c.0.s8 %v319
    %v321 = vlaneseq
    %v322 = vshrl.u32 %v321, 7
    %v323 = vsub.s32 %v320, %v322
    %v324 = vrot.slane %v316, %v323
    %v326 = vunpack.c.l.s4 1983009808
    %v327 = vunpack.c.0.s8 %v326
    %v328 = vlaneseq
    %v329 = vshrl.u32 %v328, 7
    %v330 = vsub.s32 %v327, %v329
    %v331 = vrot.slane %v317, %v330
    %v332 = vcombine.low %v324, %v331
    %335 = vst [vmem:[#allocation7] sm:$0xff] %v315
    %336 = vst [vmem:[#allocation7 + $0x8] sm:$0xff] %v332
    // Predicated region
    $region26: #{tpu_custom_call.1} parent=1 // pred_check
      _
    $region27: #{tpu_custom_call.1} parent=1 // pred_check_branch
      %338 = sbr.rel (0) target = $region29
    $region28: #{tpu_custom_call.1} parent=1 // pred_region
      %s340 = ssub.s32 256, 256
      %341 = vsyncadd [#allocation4], %s340
      %s343 = sshll.u32 [#allocation7], 4
      %s344 = int_to_ptr.vmem [resolvable:$true] %s343
      %346 = dma.vmem_to_hbm [thread:$0]  %s344, 256, %s4, [#allocation4]
    $region29: #{tpu_custom_call.1} parent=1 // pred_fallthru
      _
    // Predicated region
    $region30: #{tpu_custom_call.1} parent=1 // pred_check
      _
    $region31: #{tpu_custom_call.1} parent=1 // pred_check_branch
      %348 = sbr.rel (0) target = $region33
    $region32: #{tpu_custom_call.1} parent=1 // pred_region
      %349 = dma.done [#allocation4], 256
    $region33: #{tpu_custom_call.1} parent=1 // pred_fallthru
      _
    %350 = vsyncpa [#allocation3], 1
    %351 = vsyncpa [#allocation6], 1
    %352 = vsyncpa [#allocation4], 1

</llo_original>
